<compile_context>
chip_gen: v6e
topology: v6e:2x2x1
jax: 0.10.0
libtpu: 0.0.40
codegen_flags: <defaults>
</compile_context>

<pallas_src>
import jax
import jax.numpy as jnp
from jax.experimental import pallas as pl
from jax.experimental.pallas import tpu as pltpu


# --------------------------------------------------------------------------- kernel

def value_model_kernel(x_ref, wb_ref, bb_ref, mask_ref, wv_ref, bv_ref,
                       out_ref, acc_ref):
    # x_ref:    [TB, TK]  last-token embeddings (bf16), K-tile of Hin
    # wb_ref:   [TK, H]   base-model projection weight (bf16), K-tile of Hin
    # bb_ref:   [1, H]    base-model projection bias (f32)
    # mask_ref: [TB, 1]   attention mask at the last position (f32)
    # wv_ref:   [1, H]    value-head weight, lane-dense row (f32)
    # bv_ref:   [1, 1]    value-head bias (f32, SMEM scalar)
    # out_ref:  [TB, 1]   scalar value per sequence
    # acc_ref:  [TB, H]   f32 VMEM accumulator over the Hin reduction axis
    k = pl.program_id(1)

    @pl.when(k == 0)
    def _init():
        acc_ref[...] = jnp.zeros_like(acc_ref)

    # MXU: bf16 x bf16 -> f32 accumulate, K-tiled over Hin.
    acc_ref[...] += jnp.dot(x_ref[...], wb_ref[...],
                            preferred_element_type=jnp.float32)

    @pl.when(k == pl.num_programs(1) - 1)
    def _finalize():
        # f32 epilogue (v5e VPU/EUP have no bf16 path).
        h = jnp.tanh(acc_ref[...] + bb_ref[...])                    # (TB, H)
        # Value head: VPU multiply + cross-lane reduce; mask factored out as a
        # per-row scalar instead of a (TB, H) broadcast-multiply.
        row = jnp.sum(h * wv_ref[...], axis=-1, keepdims=True)      # (TB, 1)
        out_ref[...] = (mask_ref[...] * row + bv_ref[0, 0]).astype(out_ref.dtype)


# --------------------------------------------------------------------------- tiling helpers

def _round_up(x, m):
    return ((x + m - 1) // m) * m


def _largest_tile(dim, pref, quantum=128):
    """Largest multiple of `quantum` that divides `dim` and is <= pref (dim % quantum == 0)."""
    if dim <= pref:
        return dim
    best = quantum
    t = quantum
    while t <= pref:
        if dim % t == 0:
            best = t
        t += quantum
    return best


def _tpu_generation():
    try:
        kind = jax.devices()[0].device_kind.lower()
    except Exception:
        return "unknown"
    return "v7x" if "v7" in kind else "other"


def _select_tiles(b_pad, hin_pad, h_pad, gen):
    """Per-generation tile / VMEM-budget selection (HBM-bound on the W_base stream)."""
    if gen == "v7x":
        vmem_budget = 28 << 20          # 64 MiB physical / 32 MiB scoped on v7x
        tk_pref = 512
        want_tiles = 2 if b_pad >= 32 else 1   # shard batch over the 2 TensorCores
    else:
        vmem_budget = 64 << 20          # 128 MiB physical on v5e/v6e
        tk_pref = 1024
        want_tiles = 1                  # stream W_base exactly once

    tb = b_pad // want_tiles            # b_pad is a multiple of 16 -> tb multiple of 8
    tk = _largest_tile(hin_pad, tk_pref)

    def vmem_bytes(tb_, tk_):
        wb = 2 * tk_ * h_pad * 2        # double-buffered bf16 weight tile (dominant)
        xx = 2 * tb_ * tk_ * 2          # double-buffered bf16 x tile
        acc = tb_ * h_pad * 4           # f32 accumulator
        rows = 2 * 2 * h_pad * 4        # bias + value-head rows (double-buffered)
        small = 4 * tb_ * 4             # mask tile + output tile
        return wb + xx + acc + rows + small

    while vmem_bytes(tb, tk) > vmem_budget and tk > 128:
        tk = _largest_tile(hin_pad, tk // 2)
    while vmem_bytes(tb, tk) > vmem_budget and tb > 8 and tb % 16 == 0:
        tb //= 2
    return tb, tk, vmem_bytes(tb, tk)


# --------------------------------------------------------------------------- params

def make_params(key, vocab_size, hidden_in, hidden):
    k0, k1, k2, k3, k4 = jax.random.split(key, 5)
    return {
        "embedding": jax.random.normal(k0, (vocab_size, hidden_in), jnp.float32) * 0.1,
        "w_base":    jax.random.normal(k1, (hidden_in, hidden), jnp.float32) * 0.1,
        "b_base":    jax.random.normal(k2, (1, hidden), jnp.float32) * 0.1,
        # value_head = nn.Linear(hidden_size, 1)
        "w_value":   jax.random.normal(k3, (hidden, 1), jnp.float32) * 0.1,
        "b_value":   jax.random.normal(k4, (1, 1), jnp.float32) * 0.1,
    }


def prepare_params(params):
    """One-time setup: pad Hin/H to multiples of 128 and pre-cast MXU operands to bf16.

    Padding with zeros is exact: padded Hin rows/cols contribute 0 to the matmul, and padded
    H columns give tanh(0 + 0) * 0 = 0 in the value-head reduction.
    """
    emb = params["embedding"]
    wb = params["w_base"]
    bb = params["b_base"].reshape(1, -1)
    wv = params["w_value"].reshape(1, -1)
    bv = params["b_value"].reshape(1, 1)

    hin, h = wb.shape
    hin_pad = _round_up(hin, 128)
    h_pad = _round_up(h, 128)

    emb = jnp.pad(emb, ((0, 0), (0, hin_pad - hin)))
    wb = jnp.pad(wb, ((0, hin_pad - hin), (0, h_pad - h)))
    bb = jnp.pad(bb, ((0, 0), (0, h_pad - h)))
    wv = jnp.pad(wv, ((0, 0), (0, h_pad - h)))

    return {
        "embedding_bf16": emb.astype(jnp.bfloat16),   # gather output is bf16 directly
        "w_base_bf16":    wb.astype(jnp.bfloat16),
        "b_base_f32":     bb.astype(jnp.float32),
        "w_value_f32":    wv.astype(jnp.float32),
        "b_value_f32":    bv.astype(jnp.float32),
        "hin_pad":        hin_pad,
        "h_pad":          h_pad,
    }


# --------------------------------------------------------------------------- forward

def value_model_forward(input_ids, attention_mask, prep):
    """Glue: last-token gather from the pre-cast bf16 table, fused Pallas kernel for the rest."""
    B = input_ids.shape[0]
    hin_pad = prep["hin_pad"]
    h_pad = prep["h_pad"]

    # Spec uses the literal last position (hidden_states[:, -1, :]); only that row is gathered.
    emb_last = prep["embedding_bf16"][input_ids[:, -1]]              # (B, Hin_pad) bf16
    mask_last = attention_mask[:, -1:].astype(jnp.float32)           # (B, 1)

    # Pad batch to a multiple of 16 (bf16 sublane packing); extra rows are sliced off at the end.
    b_pad = _round_up(max(B, 16), 16)
    if b_pad != B:
        emb_last = jnp.pad(emb_last, ((0, b_pad - B), (0, 0)))
        mask_last = jnp.pad(mask_last, ((0, b_pad - B), (0, 0)))

    gen = _tpu_generation()
    tb, tk, vmem_needed = _select_tiles(b_pad, hin_pad, h_pad, gen)
    grid = (b_pad // tb, hin_pad // tk)

    vmem_cap = (48 << 20) if gen == "v7x" else (100 << 20)
    vmem_limit = int(min(max(vmem_needed + (8 << 20), 32 << 20), vmem_cap))

    cost = pl.CostEstimate(
        flops=2 * b_pad * hin_pad * h_pad + 3 * b_pad * h_pad,
        transcendentals=b_pad * h_pad,
        bytes_accessed=(emb_last.size * 2
                        + prep["w_base_bf16"].size * 2 * grid[0]     # W streamed once per batch tile
                        + (2 * h_pad + 1 + 2 * b_pad) * 4),
    )

    out = pl.pallas_call(
        value_model_kernel,
        out_shape=jax.ShapeDtypeStruct((b_pad, 1), jnp.float32),
        grid_spec=pltpu.PrefetchScalarGridSpec(
            num_scalar_prefetch=0,
            grid=grid,
            in_specs=[
                pl.BlockSpec((tb, tk), lambda b, k: (b, k)),          # x last-token (bf16)
                pl.BlockSpec((tk, h_pad), lambda b, k: (k, 0)),       # W_base (K-tiled, bf16)
                pl.BlockSpec((1, h_pad), lambda b, k: (0, 0)),        # b_base row
                pl.BlockSpec((tb, 1), lambda b, k: (b, 0)),           # mask at last position
                pl.BlockSpec((1, h_pad), lambda b, k: (0, 0)),        # value-head weight row
                pl.BlockSpec(memory_space=pltpu.MemorySpace.SMEM),    # value-head bias scalar
            ],
            out_specs=pl.BlockSpec((tb, 1), lambda b, k: (b, 0)),
            scratch_shapes=[pltpu.VMEM((tb, h_pad), jnp.float32)],
        ),
        compiler_params=pltpu.CompilerParams(
            dimension_semantics=("parallel", "arbitrary"),
            vmem_limit_bytes=vmem_limit),
        cost_estimate=cost,
    )(emb_last, prep["w_base_bf16"], prep["b_base_f32"], mask_last,
      prep["w_value_f32"], prep["b_value_f32"])

    return out[:B]


# --------------------------------------------------------------------------- demo

if __name__ == "__main__":
    B, S, H_IN, H, VOCAB = 2, 8, 32, 32, 16

    key = jax.random.PRNGKey(0)
    k_ids, k_params = jax.random.split(key)

    input_ids = jax.random.randint(k_ids, (B, S), 0, VOCAB, dtype=jnp.int32)
    attention_mask = jnp.ones((B, S), dtype=jnp.int32)

    params = make_params(k_params, VOCAB, H_IN, H)
    prep = prepare_params(params)          # one-time: pad + pre-cast (not on the per-call path)

    value = value_model_forward(input_ids, attention_mask, prep)
    jax.block_until_ready(value)
    assert value.shape == (B, 1)

    # Pure-JAX f32 reference of the same forward (loose tolerance for bf16 MXU inputs).
    emb_f32 = params["embedding"][input_ids[:, -1]]
    hid = jnp.tanh(emb_f32 @ params["w_base"] + params["b_base"])
    hid = hid * attention_mask[:, -1:].astype(jnp.float32)
    ref = hid @ params["w_value"] + params["b_value"]
    assert jnp.allclose(value, ref, atol=5e-2, rtol=5e-2)

    print("KERNEL_OK")
</pallas_src>

<mosaic_0001>
module attributes {stable_mosaic.version = 11 : i64} {
  func.func @value_model_kernel(%arg0: i32, %arg1: i32, %arg2: memref<16x128xbf16, #tpu.memory_space<vmem>>, %arg3: memref<128x128xbf16, #tpu.memory_space<vmem>>, %arg4: memref<1x128xf32, #tpu.memory_space<vmem>>, %arg5: memref<16x1xf32, #tpu.memory_space<vmem>>, %arg6: memref<1x128xf32, #tpu.memory_space<vmem>>, %arg7: memref<1x1xf32, #tpu.memory_space<smem>>, %arg8: memref<16x1xf32, #tpu.memory_space<vmem>>, %arg9: memref<16x128xf32, #tpu.memory_space<vmem>>) attributes {dimension_semantics = [#tpu.dimension_semantics<parallel>, #tpu.dimension_semantics<arbitrary>], iteration_bounds = array<i64: 1, 1>, scalar_prefetch = 0 : i64, scratch_operands = 1 : i64, tpu.core_type = #tpu.core_type<tc>, window_params = [{transform_indices = @transform_0, window_bounds = array<i64: 16, 128>}, {transform_indices = @transform_1, window_bounds = array<i64: 128, 128>}, {pipeline_mode = #tpu.pipeline_mode<synchronous>, transform_indices = @transform_2, window_bounds = array<i64: 1, 128>}, {transform_indices = @transform_3, window_bounds = array<i64: 16, 1>}, {pipeline_mode = #tpu.pipeline_mode<synchronous>, transform_indices = @transform_4, window_bounds = array<i64: 1, 128>}, {transform_indices = @transform_5, window_bounds = array<i64: 1, 1>}, {transform_indices = @transform_6, window_bounds = array<i64: 16, 1>}]} {
    %c0_i32 = arith.constant 0 : i32
    %0 = arith.cmpi eq, %arg1, %c0_i32 : i32
    %1 = arith.extui %0 : i1 to i32
    %c0_i32_0 = arith.constant 0 : i32
    %2 = arith.cmpi ne, %1, %c0_i32_0 : i32
    scf.if %2 {
      %cst_10 = arith.constant 0.000000e+00 : f32
      %12 = vector.broadcast %cst_10 : f32 to vector<16x128xf32>
      %c0_11 = arith.constant 0 : index
      %c0_12 = arith.constant 0 : index
      %13 = vector.load %arg9[%c0_11, %c0_12] : memref<16x128xf32, #tpu.memory_space<vmem>>, vector<16x128xf32>
      tpu.vector_store %arg9[%c0_11, %c0_12], %12 {strides = array<i32>} : memref<16x128xf32, #tpu.memory_space<vmem>>, vector<16x128xf32>,
    } else {
    }
    %c0 = arith.constant 0 : index
    %c0_1 = arith.constant 0 : index
    %3 = vector.load %arg9[%c0, %c0_1] : memref<16x128xf32, #tpu.memory_space<vmem>>, vector<16x128xf32>
    %c0_2 = arith.constant 0 : index
    %c0_3 = arith.constant 0 : index
    %4 = vector.load %arg2[%c0_2, %c0_3] : memref<16x128xbf16, #tpu.memory_space<vmem>>, vector<16x128xbf16>
    %c0_4 = arith.constant 0 : index
    %c0_5 = arith.constant 0 : index
    %5 = vector.load %arg3[%c0_4, %c0_5] : memref<128x128xbf16, #tpu.memory_space<vmem>>, vector<128x128xbf16>
    %cst = arith.constant dense<0.000000e+00> : vector<16x128xf32>
    %6 = tpu.matmul %4, %5, %cst {dimension_numbers = #tpu.dot_dimension_numbers<[1], [0], [0], [1], [0, 0, 1, 1], [], []>} : vector<16x128xbf16>, vector<128x128xbf16>, vector<16x128xf32> -> vector<16x128xf32>
    %7 = arith.addf %3, %6 : vector<16x128xf32>
    %c0_6 = arith.constant 0 : index
    %c0_7 = arith.constant 0 : index
    %8 = vector.load %arg9[%c0_6, %c0_7] : memref<16x128xf32, #tpu.memory_space<vmem>>, vector<16x128xf32>
    tpu.vector_store %arg9[%c0_6, %c0_7], %7 {strides = array<i32>} : memref<16x128xf32, #tpu.memory_space<vmem>>, vector<16x128xf32>,
    %c0_i32_8 = arith.constant 0 : i32
    %9 = arith.cmpi eq, %arg1, %c0_i32_8 : i32
    %10 = arith.extui %9 : i1 to i32
    %c0_i32_9 = arith.constant 0 : i32
    %11 = arith.cmpi ne, %10, %c0_i32_9 : i32
    scf.if %11 {
      %c0_10 = arith.constant 0 : index
      %c0_11 = arith.constant 0 : index
      %12 = vector.load %arg9[%c0_10, %c0_11] : memref<16x128xf32, #tpu.memory_space<vmem>>, vector<16x128xf32>
      %c0_12 = arith.constant 0 : index
      %c0_13 = arith.constant 0 : index
      %13 = vector.load %arg4[%c0_12, %c0_13] : memref<1x128xf32, #tpu.memory_space<vmem>>, vector<1x128xf32>
      %14 = vector.broadcast %13 : vector<1x128xf32> to vector<16x128xf32>
      %15 = arith.addf %12, %14 : vector<16x128xf32>
      %16 = math.tanh %15 : vector<16x128xf32>
      %c0_14 = arith.constant 0 : index
      %c0_15 = arith.constant 0 : index
      %17 = vector.load %arg6[%c0_14, %c0_15] : memref<1x128xf32, #tpu.memory_space<vmem>>, vector<1x128xf32>
      %18 = vector.broadcast %17 : vector<1x128xf32> to vector<16x128xf32>
      %19 = arith.mulf %16, %18 : vector<16x128xf32>
      %cst_16 = arith.constant dense<0.000000e+00> : vector<16xf32>
      %20 = vector.multi_reduction <add>, %19, %cst_16 [1] : vector<16x128xf32> to vector<16xf32>
      %21 = vector.shape_cast %20 : vector<16xf32> to vector<16x1xf32>
      %c0_17 = arith.constant 0 : index
      %c0_18 = arith.constant 0 : index
      %22 = vector.load %arg5[%c0_17, %c0_18] : memref<16x1xf32, #tpu.memory_space<vmem>>, vector<16x1xf32>
      %23 = arith.mulf %22, %21 : vector<16x1xf32>
      %c0_19 = arith.constant 0 : index
      %c0_20 = arith.constant 0 : index
      %24 = memref.load %arg7[%c0_19, %c0_20] : memref<1x1xf32, #tpu.memory_space<smem>>
      %25 = vector.broadcast %24 : f32 to vector<16x1xf32>
      %26 = arith.addf %23, %25 : vector<16x1xf32>
      %c0_21 = arith.constant 0 : index
      %c0_22 = arith.constant 0 : index
      %27 = vector.load %arg8[%c0_21, %c0_22] : memref<16x1xf32, #tpu.memory_space<vmem>>, vector<16x1xf32>
      tpu.vector_store %arg8[%c0_21, %c0_22], %26 {strides = array<i32>} : memref<16x1xf32, #tpu.memory_space<vmem>>, vector<16x1xf32>,
    } else {
    }
    return
  }
  func.func @transform_0(%arg0: i32, %arg1: i32) -> (i32, i32) {
    %c0_i32 = arith.constant 0 : i32
    return %arg0, %arg1 : i32, i32
  }
  func.func @transform_1(%arg0: i32, %arg1: i32) -> (i32, i32) {
    %c0_i32 = arith.constant 0 : i32
    %c0_i32_0 = arith.constant 0 : i32
    return %arg1, %c0_i32 : i32, i32
  }
  func.func @transform_2(%arg0: i32, %arg1: i32) -> (i32, i32) {
    %c0_i32 = arith.constant 0 : i32
    %c0_i32_0 = arith.constant 0 : i32
    %c0_i32_1 = arith.constant 0 : i32
    return %c0_i32, %c0_i32_0 : i32, i32
  }
  func.func @transform_3(%arg0: i32, %arg1: i32) -> (i32, i32) {
    %c0_i32 = arith.constant 0 : i32
    %c0_i32_0 = arith.constant 0 : i32
    return %arg0, %c0_i32 : i32, i32
  }
  func.func @transform_4(%arg0: i32, %arg1: i32) -> (i32, i32) {
    %c0_i32 = arith.constant 0 : i32
    %c0_i32_0 = arith.constant 0 : i32
    %c0_i32_1 = arith.constant 0 : i32
    return %c0_i32, %c0_i32_0 : i32, i32
  }
  func.func @transform_5(%arg0: i32, %arg1: i32) -> (i32, i32) {
    %c0_i32 = arith.constant 0 : i32
    %c0_i32_0 = arith.constant 0 : i32
    %c0_i32_1 = arith.constant 0 : i32
    return %c0_i32, %c0_i32_0 : i32, i32
  }
  func.func @transform_6(%arg0: i32, %arg1: i32) -> (i32, i32) {
    %c0_i32 = arith.constant 0 : i32
    %c0_i32_0 = arith.constant 0 : i32
    return %arg0, %c0_i32 : i32, i32
  }
}

</mosaic_0001>

<llo_original>
// kernel: tpu_custom_call.1
$region0: #{tpu_custom_call.1}
  #allocation0 [shape = 'u32[]', space=smem, size = 0x4, offset = 0x4, fixed_abs, tag = 'smem constant byte address 0x4 - core index']
  #allocation1 [shape = 'u32[144,128]{1,0:T(1,128)}', space=vmem, size = 0x12000, scoped, tag = 'internal scratch']
  #allocation2 [shape = 'f32[16,128]{1,0:T(8,128)}', space=vmem, size = 0x2000, scoped, tag = 'scratch operand']
  #allocation3 [shape = 'f32[1,1]{1,0:T(1,128)S(6)}', space=smem, size = 0x200, scoped, tag = 'scoped memory for tpu_custom_call.1']
  %s0 = inlined_call_operand.vmem [shape: bf16[16,128], index: 0, kind: input, shape index: {}]
  %s1 = inlined_call_operand.hbm [shape: bf16[128,128], index: 1, kind: input, shape index: {}]
  %s2 = inlined_call_operand.vmem [shape: f32[1,128], index: 2, kind: input, shape index: {}]
  %s3 = inlined_call_operand.vmem [shape: f32[16,1], index: 3, kind: input, shape index: {}]
  %s4 = inlined_call_operand.vmem [shape: f32[1,128], index: 4, kind: input, shape index: {}]
  %s5 = inlined_call_operand.<no memory space> [shape: f32[1,1], index: 5, kind: input, shape index: {}]
  %s6 = inlined_call_operand.vmem [shape: f32[16,1], index: 6, kind: output, shape index: {}]
  %s7 = sld [smem:[#allocation0]]
  $region46: #{tpu_custom_call.1} parent=0
    _
  %s9 = ssub.s32 1, %s7
  %s10 = scalar_select 0, %s9, %s7
  %11 = sst [smem:[#allocation3]] %s5
  $region1: #{tpu_custom_call.1} parent=0
    #allocation4 [shape = 'u8[32768]{0}', space=vmem, size = 0x8000, scoped, tag = 'input window, operand 1, single buffered']
    #allocation5 [shape = 's32[1]{0}', space=sflag, size = 0x4, scoped, tag = 'scoped memory for tpu_custom_call.1']
    %12 = vsyncpa [#allocation5], 0
    // Predicated region
    $region2: #{tpu_custom_call.1} parent=1 // pred_check
      _
    $region3: #{tpu_custom_call.1} parent=1 // pred_check_branch
      %14 = sbr.rel (0) target = $region5
    $region4: #{tpu_custom_call.1} parent=1 // pred_region
      _
    $region5: #{tpu_custom_call.1} parent=1 // pred_fallthru
      _
    // Predicated region
    $region6: #{tpu_custom_call.1} parent=1 // pred_check
      _
    $region7: #{tpu_custom_call.1} parent=1 // pred_check_branch
      %16 = sbr.rel (0) target = $region9
    $region8: #{tpu_custom_call.1} parent=1 // pred_region
      %s18 = ssub.s32 1024, 1024
      %19 = vsyncadd [#allocation5], %s18
      %s20 = sshll.u32 [#allocation4], 4
      %s21 = int_to_ptr.vmem [resolvable:$true] %s20
      %26 = dma.hbm_to_vmem [thread:$0]  %s1, 1024, %s21, [#allocation5], 64, 64, 4
    $region9: #{tpu_custom_call.1} parent=1 // pred_fallthru
      _
    // Predicated region
    $region10: #{tpu_custom_call.1} parent=1 // pred_check
      _
    $region11: #{tpu_custom_call.1} parent=1 // pred_check_branch
      %28 = sbr.rel (0) target = $region13
    $region12: #{tpu_custom_call.1} parent=1 // pred_region
      _
    $region13: #{tpu_custom_call.1} parent=1 // pred_fallthru
      _
    // Predicated region
    $region14: #{tpu_custom_call.1} parent=1 // pred_check
      _
    $region15: #{tpu_custom_call.1} parent=1 // pred_check_branch
      %30 = sbr.rel (0) target = $region17
    $region16: #{tpu_custom_call.1} parent=1 // pred_region
      _
    $region17: #{tpu_custom_call.1} parent=1 // pred_fallthru
      _
    // Predicated region
    $region18: #{tpu_custom_call.1} parent=1 // pred_check
      _
    $region19: #{tpu_custom_call.1} parent=1 // pred_check_branch
      %32 = sbr.rel (0) target = $region21
    $region20: #{tpu_custom_call.1} parent=1 // pred_region
      _
    $region21: #{tpu_custom_call.1} parent=1 // pred_fallthru
      _
    // Predicated region
    $region22: #{tpu_custom_call.1} parent=1 // pred_check
      _
    $region23: #{tpu_custom_call.1} parent=1 // pred_check_branch
      %34 = sbr.rel (0) target = $region25
    $region24: #{tpu_custom_call.1} parent=1 // pred_region
      _
    $region25: #{tpu_custom_call.1} parent=1 // pred_fallthru
      _
    // Predicated region
    $region26: #{tpu_custom_call.1} parent=1 // pred_check
      _
    $region27: #{tpu_custom_call.1} parent=1 // pred_check_branch
      %36 = sbr.rel (0) target = $region29
    $region28: #{tpu_custom_call.1} parent=1 // pred_region
      %37 = dma.done [#allocation5], 1024
    $region29: #{tpu_custom_call.1} parent=1 // pred_fallthru
      _
    %p39 = scmp.eq.s32.totalorder 0, 0
    // Predicated region
    $region30: #{tpu_custom_call.1} parent=1 // pred_check
      %p40 = pneg %p39
    $region31: #{tpu_custom_call.1} parent=1 // pred_check_branch
      %42 = sbr.rel (%p40) target = $region33
    $region32: #{tpu_custom_call.1} parent=1 // pred_region
      %43 = vst [vmem:[#allocation2] sm:$0xff] 0.0
      %44 = vst [vmem:[#allocation2 + $0x8] sm:$0xff] 0.0
    $region33: #{tpu_custom_call.1} parent=1 // pred_fallthru
      _
    %v45 = vld [vmem:[#allocation2] sm:$0xff]
    %v46 = vld [vmem:[#allocation2 + $0x8] sm:$0xff]
    %v47 = vld [vmem:[%s0] sm:$0xf]
    %v48 = vld [vmem:[%s0 + $0x4] sm:$0xf]
    %v49 = vld [vmem:[#allocation4] sm:$0xf]
    %v50 = vld [vmem:[#allocation4 + $0x4] sm:$0xf]
    %v51 = vld [vmem:[#allocation4 + $0x8] sm:$0xf]
    %v52 = vld [vmem:[#allocation4 + $0xc] sm:$0xf]
    %v53 = vld [vmem:[#allocation4 + $0x10] sm:$0xf]
    %v54 = vld [vmem:[#allocation4 + $0x14] sm:$0xf]
    %v55 = vld [vmem:[#allocation4 + $0x18] sm:$0xf]
    %v56 = vld [vmem:[#allocation4 + $0x1c] sm:$0xf]
    %v57 = vld [vmem:[#allocation4 + $0x20] sm:$0xf]
    %v58 = vld [vmem:[#allocation4 + $0x24] sm:$0xf]
    %v59 = vld [vmem:[#allocation4 + $0x28] sm:$0xf]
    %v60 = vld [vmem:[#allocation4 + $0x2c] sm:$0xf]
    %v61 = vld [vmem:[#allocation4 + $0x30] sm:$0xf]
    %v62 = vld [vmem:[#allocation4 + $0x34] sm:$0xf]
    %v63 = vld [vmem:[#allocation4 + $0x38] sm:$0xf]
    %v64 = vld [vmem:[#allocation4 + $0x3c] sm:$0xf]
    %v67 = vunpack.c.l.b16 %v47
    %v68 = vunpack.c.l.b16 %v48
    %v69 = vpack.c.b16 %v68, %v67
    %v87 = vunpack.c.l.b16 %v49
    %v88 = vunpack.c.l.b16 %v50
    %v89 = vunpack.c.l.b16 %v51
    %v90 = vunpack.c.l.b16 %v52
    %v91 = vunpack.c.l.b16 %v53
    %v92 = vunpack.c.l.b16 %v54
    %v93 = vunpack.c.l.b16 %v55
    %v94 = vunpack.c.l.b16 %v56
    %v95 = vunpack.c.l.b16 %v57
    %v96 = vunpack.c.l.b16 %v58
    %v97 = vunpack.c.l.b16 %v59
    %v98 = vunpack.c.l.b16 %v60
    %v99 = vunpack.c.l.b16 %v61
    %v100 = vunpack.c.l.b16 %v62
    %v101 = vunpack.c.l.b16 %v63
    %v102 = vunpack.c.l.b16 %v64
    %v103 = vpack.c.b16 %v88, %v87
    %v104 = vpack.c.b16 %v90, %v89
    %v105 = vpack.c.b16 %v92, %v91
    %v106 = vpack.c.b16 %v94, %v93
    %v107 = vpack.c.b16 %v96, %v95
    %v108 = vpack.c.b16 %v98, %v97
    %v109 = vpack.c.b16 %v100, %v99
    %v110 = vpack.c.b16 %v102, %v101
    %119 = vmatprep.subr.bf16.mxu0 0
    %120 = vmatpush1.bf16.msra.mxu0 %v110
    %121 = vmatprep.subr.bf16.mxu0 0
    %122 = vmatpush1.bf16.msra.mxu0 %v109
    %123 = vmatprep.subr.bf16.mxu0 0
    %124 = vmatpush1.bf16.msra.mxu0 %v108
    %125 = vmatprep.subr.bf16.mxu0 0
    %126 = vmatpush1.bf16.msra.mxu0 %v107
    %127 = vmatprep.subr.bf16.mxu0 0
    %128 = vmatpush1.bf16.msra.mxu0 %v106
    %129 = vmatprep.subr.bf16.mxu0 0
    %130 = vmatpush1.bf16.msra.mxu0 %v105
    %131 = vmatprep.subr.bf16.mxu0 0
    %132 = vmatpush1.bf16.msra.mxu0 %v104
    %133 = vmatprep.subr.bf16.mxu0 0
    %134 = vmatpush1.bf16.msra.mxu0 %v103
    %135 = vmatprep.subr.bf16.mxu0 0
    %136 = vmatpush2.bf16.msra.mxu0 0
    %137 = vmatprep.subr.bf16.mxu0 0
    %138 = vmatpush2.bf16.msra.mxu0 0
    %139 = vmatprep.subr.bf16.mxu0 0
    %140 = vmatpush2.bf16.msra.mxu0 0
    %141 = vmatprep.subr.bf16.mxu0 0
    %142 = vmatpush2.bf16.msra.mxu0 0
    %143 = vmatprep.subr.bf16.mxu0 0
    %144 = vmatpush2.bf16.msra.mxu0 0
    %145 = vmatprep.subr.bf16.mxu0 0
    %146 = vmatpush2.bf16.msra.mxu0 0
    %147 = vmatprep.subr.bf16.mxu0 0
    %148 = vmatpush2.bf16.msra.mxu0 0
    %149 = vmatprep.subr.bf16.mxu0 0
    %150 = vmatpush2.bf16.msra.mxu0 0
    %151 = vmatprep.mubr.bf16.mxu0 0
    %152 = vmatmul.mubr.bf16.gmra.mxu0 %v69
    %v153 = vpop.f32.mrf.mxu0
    %v154 = vadd.f32 0.0, %v153
    %v155 = vpop.f32.mrf.mxu0
    %v156 = vpop.f32.mrf.mxu0
    %v157 = vadd.f32 0.0, %v156
    %v158 = vpop.f32.mrf.mxu0
    %159 = vdwg.mxu0
    %v160 = vadd.f32 %v45, %v154
    %v161 = vadd.f32 %v46, %v157
    %162 = vst [vmem:[#allocation2] sm:$0xff] %v160
    %163 = vst [vmem:[#allocation2 + $0x8] sm:$0xff] %v161
    // Predicated region
    $region34: #{tpu_custom_call.1} parent=1 // pred_check
      %p164 = pneg %p39
    $region35: #{tpu_custom_call.1} parent=1 // pred_check_branch
      %166 = sbr.rel (%p164) target = $region37
    $region36: #{tpu_custom_call.1} parent=1 // pred_region
      %v167 = vld [vmem:[#allocation2] sm:$0xff]
      %v168 = vld [vmem:[#allocation2 + $0x8] sm:$0xff]
      %v169 = vld [vmem:[%s2] sm:$0x1]
      %v171 = vlaneseq
      %v172 = vshrl.u32 %v171, 7
      %v173 = vsub.s32 0, %v172
      %v174 = vrot.slane %v169, %v173
      %v176 = vadd.f32 %v167, %v174
      %v177 = vadd.f32 %v168, %v174
      %v178 = vtanh.pop %v176
      %v179 = vtanh.pop %v177
      %v180 = vld [vmem:[%s4] sm:$0x1]
      %v182 = vlaneseq
      %v183 = vshrl.u32 %v182, 7
      %v184 = vsub.s32 0, %v183
      %v185 = vrot.slane %v180, %v184
      %v187 = vmul.f32 %v178, %v185
      %v188 = vmul.f32 %v179, %v185
      %189 = vadd.xlane.f32.xlu0 %v187
      %v190 = vpop.xlane.xlu0 %189
      %191 = vadd.xlane.f32.xlu0 %v188
      %v192 = vpop.xlane.xlu0 %191
      %v193 = vld [vmem:[%s3] sm:$0xff]
      %v194 = vld [vmem:[%s3 + $0x8] sm:$0xff]
      %v195 = vmul.f32 %v193, %v190
      %v196 = vmul.f32 %v194, %v192
      %s197 = sld [smem:[#allocation3]]
      %v198 = vstv %s197
      %v199 = vadd.f32 %v195, %v198
      %v200 = vadd.f32 %v196, %v198
      %vm201 = vcmask 7168
      %202 = vst.msk [vmem:[%s6] sm:$0xff] %vm201, %v199
      %203 = vst.msk [vmem:[%s6 + $0x8] sm:$0xff] %vm201, %v200
    $region37: #{tpu_custom_call.1} parent=1 // pred_fallthru
      _
    // Predicated region
    $region38: #{tpu_custom_call.1} parent=1 // pred_check
      _
    $region39: #{tpu_custom_call.1} parent=1 // pred_check_branch
      %205 = sbr.rel (0) target = $region41
    $region40: #{tpu_custom_call.1} parent=1 // pred_region
      _
    $region41: #{tpu_custom_call.1} parent=1 // pred_fallthru
      _
    // Predicated region
    $region42: #{tpu_custom_call.1} parent=1 // pred_check
      _
    $region43: #{tpu_custom_call.1} parent=1 // pred_check_branch
      %207 = sbr.rel (0) target = $region45
    $region44: #{tpu_custom_call.1} parent=1 // pred_region
      _
    $region45: #{tpu_custom_call.1} parent=1 // pred_fallthru
      _
    %208 = vsyncpa [#allocation5], 1

</llo_original>
